<compile_context>
chip_gen: v5e
topology: v5e:2x2
jax: 0.10.0
libtpu: 0.0.40
codegen_flags: <defaults>
</compile_context>

<pallas_src>
import jax
import jax.numpy as jnp
import numpy as np
from jax.experimental import pallas as pl
from jax.experimental.pallas import tpu as pltpu

INPUT_DIM = 16                 # stand-in for len(expected_columns)
HIDDEN_LAYER_SIZES = [128, 64, 32]
NEG_SLOPE = 0.01               # nn.LeakyReLU() default
BN_EPS = 1e-5                  # nn.BatchNorm1d default


def _cdiv(a, b):
    return (a + b - 1) // b


def _round_up(x, m):
    return _cdiv(x, m) * m


def _mlp_kernel(x_ref,
                w1_ref, b1_ref, w2_ref, b2_ref, w3_ref, b3_ref, w4_ref, b4_ref,
                o_ref):
    """Fused MLP.  Layer 1 is batch-major; after one transpose the batch lives on lanes."""
    # Layer 1 (batch-major): (tile, D) @ (D, H1) -> (tile, H1).  bf16 operands, f32 acc.
    h = jnp.dot(x_ref[...].astype(jnp.bfloat16), w1_ref[...],
                preferred_element_type=jnp.float32) + b1_ref[...]
    h = jnp.maximum(h, NEG_SLOPE * h)                       # LeakyReLU (f32)
    # Single XLU transpose (tile, H1) -> (H1, tile): batch moves to the 128-wide lane axis,
    # so every later intermediate and the final store is lane-dense.
    h = h.T
    # Layers 2-3 (feature-major): (out, in) @ (in, tile) -> (out, tile)
    for w_ref, b_ref in ((w2_ref, b2_ref), (w3_ref, b3_ref)):
        h = jnp.dot(w_ref[...], h.astype(jnp.bfloat16),
                    preferred_element_type=jnp.float32) + b_ref[...]
        h = jnp.maximum(h, NEG_SLOPE * h)
        # Dropout(0.2): identity in eval mode.
    # Output head: w4/b4 are sublane-padded to 8 rows for layout; only row 0 is real.
    out = jnp.dot(w4_ref[...], h.astype(jnp.bfloat16),
                  preferred_element_type=jnp.float32) + b4_ref[...]      # (8, tile)
    o_ref[...] = out[:1, :].astype(o_ref.dtype)                          # 1-row writeback


def fold_batchnorm(params):
    """Fold eval-mode BN into the preceding Linear (exact, f32).

    Returns math-layout list of (w, b): w (in, out), b (1, out)."""
    folded = []
    for i in (1, 2, 3):
        scale = params[f"g{i}"] * jax.lax.rsqrt(params[f"v{i}"] + BN_EPS)      # (1, out)
        w = params[f"w{i}"] * scale                                             # (in, out)
        b = (params[f"b{i}"] - params[f"m{i}"]) * scale + params[f"be{i}"]      # (1, out)
        folded.append((w, b))
    folded.append((params["w4"], params["b4"]))
    return folded


def prepare_kernel_params(folded):
    """Kernel-layout parameters: bf16 weights, f32 biases.

    Layer 1 stays (in, out) / (1, out) (batch-major); layers 2-4 are (out, in) / (out, 1)
    (feature-major); the 1-wide head is sublane-padded to 8 rows."""
    (w1, b1), (w2, b2), (w3, b3), (w4, b4) = folded
    kw1 = w1.astype(jnp.bfloat16)                                   # (D, 128)
    kb1 = b1                                                        # (1, 128) f32
    kw2 = w2.T.astype(jnp.bfloat16)                                 # (64, 128)
    kb2 = b2.T                                                      # (64, 1)  f32
    kw3 = w3.T.astype(jnp.bfloat16)                                 # (32, 64)
    kb3 = b3.T                                                      # (32, 1)  f32
    kw4 = jnp.pad(w4.T.astype(jnp.bfloat16), ((0, 7), (0, 0)))      # (8, 32)
    kb4 = jnp.pad(b4.T, ((0, 7), (0, 0)))                           # (8, 1)   f32
    return [kw1, kb1, kw2, kb2, kw3, kb3, kw4, kb4]


def _choose_tiling(B, tile_b):
    """Batch tiling: large lane-dense tiles, but always >= 2 (even) tiles when the batch
    spans more than one 128-lane chunk, so v7x's two TensorCores are both used."""
    b128 = _round_up(B, 128)
    if b128 <= 128:
        return 128, 1
    target = max(256, _round_up(tile_b, 256))
    n_tiles = max(2, _cdiv(b128, target))
    if n_tiles % 2:
        n_tiles += 1
    tile = _round_up(_cdiv(b128, n_tiles), 128)
    return tile, n_tiles


def feedforward_nn(x, params, *, tile_b=2048):
    """x: (B, D) float32.  Returns (B, 1) float32 logits (eval-mode forward)."""
    B, D = x.shape
    tile, n_tiles = _choose_tiling(B, tile_b)
    b_pad = tile * n_tiles

    kparams = prepare_kernel_params(fold_batchnorm(params))

    # Batch-major input; zero-pad ragged batches (no transpose materialized in XLA).
    x_p = x.astype(jnp.float32)
    if b_pad != B:
        x_p = jnp.pad(x_p, ((0, b_pad - B), (0, 0)))

    in_specs = [pl.BlockSpec((tile, D), lambda i: (i, 0))]
    in_specs += [pl.BlockSpec(p.shape, lambda i: (0, 0)) for p in kparams]  # fetched once
    out_spec = pl.BlockSpec((1, tile), lambda i: (0, i))                    # 1-row, lane-dense

    out = pl.pallas_call(
        _mlp_kernel,
        out_shape=jax.ShapeDtypeStruct((1, b_pad), jnp.float32),
        grid=(n_tiles,),
        in_specs=in_specs,
        out_specs=out_spec,
        compiler_params=pltpu.CompilerParams(
            dimension_semantics=("parallel",)),
    )(x_p, *kparams)

    return out[0, :B].reshape(B, 1)


def init_params(key, input_dim, hidden_sizes):
    """Deterministic synthetic parameters (PyTorch-style uniform Linear init)."""
    params = {}
    dims = [input_dim] + hidden_sizes + [1]
    n_layers = len(dims) - 1
    keys = jax.random.split(key, n_layers * 6)
    k_idx = 0
    for li in range(n_layers):
        fan_in, fan_out = dims[li], dims[li + 1]
        bound = 1.0 / np.sqrt(fan_in)
        params[f"w{li+1}"] = jax.random.uniform(
            keys[k_idx], (fan_in, fan_out), jnp.float32, -bound, bound); k_idx += 1
        params[f"b{li+1}"] = jax.random.uniform(
            keys[k_idx], (1, fan_out), jnp.float32, -bound, bound); k_idx += 1
        if li < len(hidden_sizes):  # hidden layers carry BatchNorm params
            params[f"g{li+1}"] = 1.0 + 0.1 * jax.random.normal(
                keys[k_idx], (1, fan_out), jnp.float32); k_idx += 1
            params[f"be{li+1}"] = 0.1 * jax.random.normal(
                keys[k_idx], (1, fan_out), jnp.float32); k_idx += 1
            params[f"m{li+1}"] = 0.1 * jax.random.normal(
                keys[k_idx], (1, fan_out), jnp.float32); k_idx += 1
            params[f"v{li+1}"] = jax.random.uniform(
                keys[k_idx], (1, fan_out), jnp.float32, 0.5, 1.5); k_idx += 1
    return params


def reference_forward(x, params, *, precision=None):
    """Pure-JAX reference matching the PyTorch module (eval mode, unfolded BN, f32)."""
    h = x
    for i in (1, 2, 3):
        h = jnp.dot(h, params[f"w{i}"], precision=precision) + params[f"b{i}"]
        h = (h - params[f"m{i}"]) * jax.lax.rsqrt(params[f"v{i}"] + BN_EPS) \
            * params[f"g{i}"] + params[f"be{i}"]
        h = jnp.where(h >= 0.0, h, NEG_SLOPE * h)
    return jnp.dot(h, params["w4"], precision=precision) + params["b4"]


def reference_forward_folded(x, folded, *, precision=None):
    """Batch-major f32 forward with the folded parameters (checks fold exactness)."""
    h = x
    for w, b in folded[:-1]:
        h = jnp.dot(h, w, precision=precision) + b
        h = jnp.maximum(h, NEG_SLOPE * h)
    w4, b4 = folded[-1]
    return jnp.dot(h, w4, precision=precision) + b4


def reference_forward_bf16(x, folded):
    """Pure-JAX emulation of the kernel arithmetic: bf16 matmul operands, f32 accumulation."""
    h = x
    for w, b in folded[:-1]:
        h = jnp.dot(h.astype(jnp.bfloat16), w.astype(jnp.bfloat16),
                    preferred_element_type=jnp.float32) + b
        h = jnp.maximum(h, NEG_SLOPE * h)
    w4, b4 = folded[-1]
    return jnp.dot(h.astype(jnp.bfloat16), w4.astype(jnp.bfloat16),
                   preferred_element_type=jnp.float32) + b4


if __name__ == "__main__":
    key = jax.random.PRNGKey(0)
    k_x, k_p, k_x2 = jax.random.split(key, 3)

    params = init_params(k_p, INPUT_DIM, HIDDEN_LAYER_SIZES)
    folded = fold_batchnorm(params)
    hp = jax.lax.Precision.HIGHEST

    # Small batch (single 128-lane tile).
    B = 8
    x = jax.random.normal(k_x, (B, INPUT_DIM), jnp.float32)
    out = jax.block_until_ready(feedforward_nn(x, params))
    assert out.shape == (B, 1)

    # (1) BN folding is exact (pure-XLA check at high matmul precision).
    np.testing.assert_allclose(
        np.asarray(reference_forward_folded(x, folded, precision=hp)),
        np.asarray(reference_forward(x, params, precision=hp)),
        rtol=1e-5, atol=1e-5)
    # (2) Kernel matches a reference using the same bf16-operand / f32-accumulate arithmetic.
    np.testing.assert_allclose(
        np.asarray(out), np.asarray(reference_forward_bf16(x, folded)),
        rtol=1e-3, atol=1e-3)
    # (3) Loose end-to-end check against the full-f32 unfolded reference (bf16 noise budget).
    np.testing.assert_allclose(
        np.asarray(out), np.asarray(reference_forward(x, params, precision=hp)),
        rtol=1e-1, atol=1e-1)

    # Ragged batch spanning several grid steps (exercises padding + even multi-tile split).
    B2 = 600
    x2 = jax.random.normal(k_x2, (B2, INPUT_DIM), jnp.float32)
    out2 = jax.block_until_ready(feedforward_nn(x2, params, tile_b=256))
    assert out2.shape == (B2, 1)
    np.testing.assert_allclose(
        np.asarray(out2), np.asarray(reference_forward_bf16(x2, folded)),
        rtol=1e-3, atol=1e-3)

    print("KERNEL_OK")
</pallas_src>

<mosaic_0001>
module attributes {stable_mosaic.version = 11 : i64} {
  func.func @_mlp_kernel(%arg0: i32, %arg1: memref<128x16xf32, #tpu.memory_space<vmem>>, %arg2: memref<16x128xbf16, #tpu.memory_space<vmem>>, %arg3: memref<1x128xf32, #tpu.memory_space<vmem>>, %arg4: memref<64x128xbf16, #tpu.memory_space<vmem>>, %arg5: memref<64x1xf32, #tpu.memory_space<vmem>>, %arg6: memref<32x64xbf16, #tpu.memory_space<vmem>>, %arg7: memref<32x1xf32, #tpu.memory_space<vmem>>, %arg8: memref<8x32xbf16, #tpu.memory_space<vmem>>, %arg9: memref<8x1xf32, #tpu.memory_space<vmem>>, %arg10: memref<1x128xf32, #tpu.memory_space<vmem>>) attributes {dimension_semantics = [#tpu.dimension_semantics<parallel>], iteration_bounds = array<i64: 1>, scalar_prefetch = 0 : i64, scratch_operands = 0 : i64, tpu.core_type = #tpu.core_type<tc>, window_params = [{transform_indices = @transform_0, window_bounds = array<i64: 128, 16>}, {pipeline_mode = #tpu.pipeline_mode<synchronous>, transform_indices = @transform_1, window_bounds = array<i64: 16, 128>}, {pipeline_mode = #tpu.pipeline_mode<synchronous>, transform_indices = @transform_2, window_bounds = array<i64: 1, 128>}, {pipeline_mode = #tpu.pipeline_mode<synchronous>, transform_indices = @transform_3, window_bounds = array<i64: 64, 128>}, {pipeline_mode = #tpu.pipeline_mode<synchronous>, transform_indices = @transform_4, window_bounds = array<i64: 64, 1>}, {pipeline_mode = #tpu.pipeline_mode<synchronous>, transform_indices = @transform_5, window_bounds = array<i64: 32, 64>}, {pipeline_mode = #tpu.pipeline_mode<synchronous>, transform_indices = @transform_6, window_bounds = array<i64: 32, 1>}, {pipeline_mode = #tpu.pipeline_mode<synchronous>, transform_indices = @transform_7, window_bounds = array<i64: 8, 32>}, {pipeline_mode = #tpu.pipeline_mode<synchronous>, transform_indices = @transform_8, window_bounds = array<i64: 8, 1>}, {transform_indices = @transform_9, window_bounds = array<i64: 1, 128>}]} {
    %c0 = arith.constant 0 : index
    %c0_0 = arith.constant 0 : index
    %0 = vector.load %arg1[%c0, %c0_0] : memref<128x16xf32, #tpu.memory_space<vmem>>, vector<128x16xf32>
    %1 = arith.truncf %0 : vector<128x16xf32> to vector<128x16xbf16>
    %c0_1 = arith.constant 0 : index
    %c0_2 = arith.constant 0 : index
    %2 = vector.load %arg2[%c0_1, %c0_2] : memref<16x128xbf16, #tpu.memory_space<vmem>>, vector<16x128xbf16>
    %cst = arith.constant dense<0.000000e+00> : vector<128x128xf32>
    %3 = tpu.matmul %1, %2, %cst {dimension_numbers = #tpu.dot_dimension_numbers<[1], [0], [0], [1], [0, 0, 1, 1], [], []>} : vector<128x16xbf16>, vector<16x128xbf16>, vector<128x128xf32> -> vector<128x128xf32>
    %c0_3 = arith.constant 0 : index
    %c0_4 = arith.constant 0 : index
    %4 = vector.load %arg3[%c0_3, %c0_4] : memref<1x128xf32, #tpu.memory_space<vmem>>, vector<1x128xf32>
    %5 = vector.broadcast %4 : vector<1x128xf32> to vector<128x128xf32>
    %6 = arith.addf %3, %5 : vector<128x128xf32>
    %cst_5 = arith.constant 0.00999999977 : f32
    %7 = vector.broadcast %cst_5 : f32 to vector<128x128xf32>
    %8 = arith.mulf %7, %6 : vector<128x128xf32>
    %9 = arith.maximumf %6, %8 : vector<128x128xf32>
    %10 = tpu.transpose %9, [1, 0] : vector<128x128xf32> -> vector<128x128xf32>
    %c0_6 = arith.constant 0 : index
    %c0_7 = arith.constant 0 : index
    %11 = vector.load %arg4[%c0_6, %c0_7] : memref<64x128xbf16, #tpu.memory_space<vmem>>, vector<64x128xbf16>
    %12 = arith.truncf %10 : vector<128x128xf32> to vector<128x128xbf16>
    %cst_8 = arith.constant dense<0.000000e+00> : vector<64x128xf32>
    %13 = tpu.matmul %11, %12, %cst_8 {dimension_numbers = #tpu.dot_dimension_numbers<[1], [0], [0], [1], [0, 0, 1, 1], [], []>} : vector<64x128xbf16>, vector<128x128xbf16>, vector<64x128xf32> -> vector<64x128xf32>
    %c0_9 = arith.constant 0 : index
    %c0_10 = arith.constant 0 : index
    %14 = vector.load %arg5[%c0_9, %c0_10] : memref<64x1xf32, #tpu.memory_space<vmem>>, vector<64x1xf32>
    %15 = vector.broadcast %14 : vector<64x1xf32> to vector<64x128xf32>
    %16 = arith.addf %13, %15 : vector<64x128xf32>
    %cst_11 = arith.constant 0.00999999977 : f32
    %17 = vector.broadcast %cst_11 : f32 to vector<64x128xf32>
    %18 = arith.mulf %17, %16 : vector<64x128xf32>
    %19 = arith.maximumf %16, %18 : vector<64x128xf32>
    %c0_12 = arith.constant 0 : index
    %c0_13 = arith.constant 0 : index
    %20 = vector.load %arg6[%c0_12, %c0_13] : memref<32x64xbf16, #tpu.memory_space<vmem>>, vector<32x64xbf16>
    %21 = arith.truncf %19 : vector<64x128xf32> to vector<64x128xbf16>
    %cst_14 = arith.constant dense<0.000000e+00> : vector<32x128xf32>
    %22 = tpu.matmul %20, %21, %cst_14 {dimension_numbers = #tpu.dot_dimension_numbers<[1], [0], [0], [1], [0, 0, 1, 1], [], []>} : vector<32x64xbf16>, vector<64x128xbf16>, vector<32x128xf32> -> vector<32x128xf32>
    %c0_15 = arith.constant 0 : index
    %c0_16 = arith.constant 0 : index
    %23 = vector.load %arg7[%c0_15, %c0_16] : memref<32x1xf32, #tpu.memory_space<vmem>>, vector<32x1xf32>
    %24 = vector.broadcast %23 : vector<32x1xf32> to vector<32x128xf32>
    %25 = arith.addf %22, %24 : vector<32x128xf32>
    %cst_17 = arith.constant 0.00999999977 : f32
    %26 = vector.broadcast %cst_17 : f32 to vector<32x128xf32>
    %27 = arith.mulf %26, %25 : vector<32x128xf32>
    %28 = arith.maximumf %25, %27 : vector<32x128xf32>
    %c0_18 = arith.constant 0 : index
    %c0_19 = arith.constant 0 : index
    %29 = vector.load %arg8[%c0_18, %c0_19] : memref<8x32xbf16, #tpu.memory_space<vmem>>, vector<8x32xbf16>
    %30 = arith.truncf %28 : vector<32x128xf32> to vector<32x128xbf16>
    %cst_20 = arith.constant dense<0.000000e+00> : vector<8x128xf32>
    %31 = tpu.matmul %29, %30, %cst_20 {dimension_numbers = #tpu.dot_dimension_numbers<[1], [0], [0], [1], [0, 0, 1, 1], [], []>} : vector<8x32xbf16>, vector<32x128xbf16>, vector<8x128xf32> -> vector<8x128xf32>
    %c0_21 = arith.constant 0 : index
    %c0_22 = arith.constant 0 : index
    %32 = vector.load %arg9[%c0_21, %c0_22] : memref<8x1xf32, #tpu.memory_space<vmem>>, vector<8x1xf32>
    %33 = vector.broadcast %32 : vector<8x1xf32> to vector<8x128xf32>
    %34 = arith.addf %31, %33 : vector<8x128xf32>
    %35 = vector.extract_strided_slice %34 {offsets = [0, 0], sizes = [1, 128], strides = [1, 1]} : vector<8x128xf32> to vector<1x128xf32>
    %c0_23 = arith.constant 0 : index
    %c0_24 = arith.constant 0 : index
    %36 = vector.load %arg10[%c0_23, %c0_24] : memref<1x128xf32, #tpu.memory_space<vmem>>, vector<1x128xf32>
    tpu.vector_store %arg10[%c0_23, %c0_24], %35 {strides = array<i32>} : memref<1x128xf32, #tpu.memory_space<vmem>>, vector<1x128xf32>,
    return
  }
  func.func @transform_0(%arg0: i32) -> (i32, i32) {
    %c0_i32 = arith.constant 0 : i32
    %c0_i32_0 = arith.constant 0 : i32
    return %arg0, %c0_i32 : i32, i32
  }
  func.func @transform_1(%arg0: i32) -> (i32, i32) {
    %c0_i32 = arith.constant 0 : i32
    %c0_i32_0 = arith.constant 0 : i32
    %c0_i32_1 = arith.constant 0 : i32
    return %c0_i32, %c0_i32_0 : i32, i32
  }
  func.func @transform_2(%arg0: i32) -> (i32, i32) {
    %c0_i32 = arith.constant 0 : i32
    %c0_i32_0 = arith.constant 0 : i32
    %c0_i32_1 = arith.constant 0 : i32
    return %c0_i32, %c0_i32_0 : i32, i32
  }
  func.func @transform_3(%arg0: i32) -> (i32, i32) {
    %c0_i32 = arith.constant 0 : i32
    %c0_i32_0 = arith.constant 0 : i32
    %c0_i32_1 = arith.constant 0 : i32
    return %c0_i32, %c0_i32_0 : i32, i32
  }
  func.func @transform_4(%arg0: i32) -> (i32, i32) {
    %c0_i32 = arith.constant 0 : i32
    %c0_i32_0 = arith.constant 0 : i32
    %c0_i32_1 = arith.constant 0 : i32
    return %c0_i32, %c0_i32_0 : i32, i32
  }
  func.func @transform_5(%arg0: i32) -> (i32, i32) {
    %c0_i32 = arith.constant 0 : i32
    %c0_i32_0 = arith.constant 0 : i32
    %c0_i32_1 = arith.constant 0 : i32
    return %c0_i32, %c0_i32_0 : i32, i32
  }
  func.func @transform_6(%arg0: i32) -> (i32, i32) {
    %c0_i32 = arith.constant 0 : i32
    %c0_i32_0 = arith.constant 0 : i32
    %c0_i32_1 = arith.constant 0 : i32
    return %c0_i32, %c0_i32_0 : i32, i32
  }
  func.func @transform_7(%arg0: i32) -> (i32, i32) {
    %c0_i32 = arith.constant 0 : i32
    %c0_i32_0 = arith.constant 0 : i32
    %c0_i32_1 = arith.constant 0 : i32
    return %c0_i32, %c0_i32_0 : i32, i32
  }
  func.func @transform_8(%arg0: i32) -> (i32, i32) {
    %c0_i32 = arith.constant 0 : i32
    %c0_i32_0 = arith.constant 0 : i32
    %c0_i32_1 = arith.constant 0 : i32
    return %c0_i32, %c0_i32_0 : i32, i32
  }
  func.func @transform_9(%arg0: i32) -> (i32, i32) {
    %c0_i32 = arith.constant 0 : i32
    %c0_i32_0 = arith.constant 0 : i32
    return %c0_i32, %arg0 : i32, i32
  }
}

</mosaic_0001>

<llo_original>
// kernel: tpu_custom_call.1
$region0: #{tpu_custom_call.1}
  #allocation0 [shape = 'u32[]', space=smem, size = 0x4, offset = 0x4, fixed_abs, tag = 'smem constant byte address 0x4 - core index']
  #allocation1 [shape = 'u32[72,128]{1,0:T(1,128)}', space=vmem, size = 0x9000, scoped, tag = 'internal scratch']
  %s0 = inlined_call_operand.vmem [shape: f32[128,16], index: 0, kind: input, shape index: {}]
  %s1 = inlined_call_operand.vmem [shape: bf16[16,128], index: 1, kind: input, shape index: {}]
  %s2 = inlined_call_operand.vmem [shape: f32[1,128], index: 2, kind: input, shape index: {}]
  %s3 = inlined_call_operand.vmem [shape: bf16[64,128], index: 3, kind: input, shape index: {}]
  %s4 = inlined_call_operand.vmem [shape: f32[64,1], index: 4, kind: input, shape index: {}]
  %s5 = inlined_call_operand.vmem [shape: bf16[32,64], index: 5, kind: input, shape index: {}]
  %s6 = inlined_call_operand.vmem [shape: f32[32,1], index: 6, kind: input, shape index: {}]
  %s7 = inlined_call_operand.vmem [shape: bf16[8,32], index: 7, kind: input, shape index: {}]
  %s8 = inlined_call_operand.vmem [shape: f32[8,1], index: 8, kind: input, shape index: {}]
  %s9 = inlined_call_operand.hbm [shape: f32[1,128], index: 9, kind: output, shape index: {}]
  %s10 = sld [smem:[#allocation0]]
  $region46: #{tpu_custom_call.1} parent=0
    _
  %s12 = ssub.s32 1, %s10
  %s13 = scalar_select 0, %s12, %s10
  $region1: #{tpu_custom_call.1} parent=0
    #allocation2 [shape = 'u8[512]{0}', space=vmem, size = 0x400, scoped, tag = 'output window, operand 0, single buffered']
    #allocation3 [shape = 's32[1]{0}', space=sflag, size = 0x4, scoped, tag = 'scoped memory for tpu_custom_call.1']
    %14 = vsyncpa [#allocation3], 0
    // Predicated region
    $region2: #{tpu_custom_call.1} parent=1 // pred_check
      _
    $region3: #{tpu_custom_call.1} parent=1 // pred_check_branch
      %16 = sbr.rel (0) target = $region5
    $region4: #{tpu_custom_call.1} parent=1 // pred_region
      _
    $region5: #{tpu_custom_call.1} parent=1 // pred_fallthru
      _
    // Predicated region
    $region6: #{tpu_custom_call.1} parent=1 // pred_check
      _
    $region7: #{tpu_custom_call.1} parent=1 // pred_check_branch
      %18 = sbr.rel (0) target = $region9
    $region8: #{tpu_custom_call.1} parent=1 // pred_region
      _
    $region9: #{tpu_custom_call.1} parent=1 // pred_fallthru
      _
    // Predicated region
    $region10: #{tpu_custom_call.1} parent=1 // pred_check
      _
    $region11: #{tpu_custom_call.1} parent=1 // pred_check_branch
      %20 = sbr.rel (0) target = $region13
    $region12: #{tpu_custom_call.1} parent=1 // pred_region
      _
    $region13: #{tpu_custom_call.1} parent=1 // pred_fallthru
      _
    // Predicated region
    $region14: #{tpu_custom_call.1} parent=1 // pred_check
      _
    $region15: #{tpu_custom_call.1} parent=1 // pred_check_branch
      %22 = sbr.rel (0) target = $region17
    $region16: #{tpu_custom_call.1} parent=1 // pred_region
      _
    $region17: #{tpu_custom_call.1} parent=1 // pred_fallthru
      _
    // Predicated region
    $region18: #{tpu_custom_call.1} parent=1 // pred_check
      _
    $region19: #{tpu_custom_call.1} parent=1 // pred_check_branch
      %24 = sbr.rel (0) target = $region21
    $region20: #{tpu_custom_call.1} parent=1 // pred_region
      _
    $region21: #{tpu_custom_call.1} parent=1 // pred_fallthru
      _
    // Predicated region
    $region22: #{tpu_custom_call.1} parent=1 // pred_check
      _
    $region23: #{tpu_custom_call.1} parent=1 // pred_check_branch
      %26 = sbr.rel (0) target = $region25
    $region24: #{tpu_custom_call.1} parent=1 // pred_region
      _
    $region25: #{tpu_custom_call.1} parent=1 // pred_fallthru
      _
    // Predicated region
    $region26: #{tpu_custom_call.1} parent=1 // pred_check
      _
    $region27: #{tpu_custom_call.1} parent=1 // pred_check_branch
      %28 = sbr.rel (0) target = $region29
    $region28: #{tpu_custom_call.1} parent=1 // pred_region
      _
    $region29: #{tpu_custom_call.1} parent=1 // pred_fallthru
      _
    // Predicated region
    $region30: #{tpu_custom_call.1} parent=1 // pred_check
      _
    $region31: #{tpu_custom_call.1} parent=1 // pred_check_branch
      %30 = sbr.rel (0) target = $region33
    $region32: #{tpu_custom_call.1} parent=1 // pred_region
      _
    $region33: #{tpu_custom_call.1} parent=1 // pred_fallthru
      _
    // Predicated region
    $region34: #{tpu_custom_call.1} parent=1 // pred_check
      _
    $region35: #{tpu_custom_call.1} parent=1 // pred_check_branch
      %32 = sbr.rel (0) target = $region37
    $region36: #{tpu_custom_call.1} parent=1 // pred_region
      _
    $region37: #{tpu_custom_call.1} parent=1 // pred_fallthru
      _
    %v34 = vld [vmem:[%s0] sm:$0xff]
    %v35 = vld [vmem:[%s0 + $0x8] sm:$0xff]
    %v36 = vld [vmem:[%s0 + $0x10] sm:$0xff]
    %v37 = vld [vmem:[%s0 + $0x18] sm:$0xff]
    %v38 = vld [vmem:[%s0 + $0x20] sm:$0xff]
    %v39 = vld [vmem:[%s0 + $0x28] sm:$0xff]
    %v40 = vld [vmem:[%s0 + $0x30] sm:$0xff]
    %v41 = vld [vmem:[%s0 + $0x38] sm:$0xff]
    %v42 = vld [vmem:[%s0 + $0x40] sm:$0xff]
    %v43 = vld [vmem:[%s0 + $0x48] sm:$0xff]
    %v44 = vld [vmem:[%s0 + $0x50] sm:$0xff]
    %v45 = vld [vmem:[%s0 + $0x58] sm:$0xff]
    %v46 = vld [vmem:[%s0 + $0x60] sm:$0xff]
    %v47 = vld [vmem:[%s0 + $0x68] sm:$0xff]
    %v48 = vld [vmem:[%s0 + $0x70] sm:$0xff]
    %v49 = vld [vmem:[%s0 + $0x78] sm:$0xff]
    %v50 = vpack.c.bf16 %v35, %v34
    %v51 = vpack.c.bf16 %v37, %v36
    %v52 = vpack.c.bf16 %v39, %v38
    %v53 = vpack.c.bf16 %v41, %v40
    %v54 = vpack.c.bf16 %v43, %v42
    %v55 = vpack.c.bf16 %v45, %v44
    %v56 = vpack.c.bf16 %v47, %v46
    %v57 = vpack.c.bf16 %v49, %v48
    %v58 = vld [vmem:[%s1] sm:$0xf]
    %v59 = vld [vmem:[%s1 + $0x4] sm:$0xf]
    %v60 = vld [vmem:[%s2] sm:$0x1]
    %v62 = vperm.slane %v60, 0
    %v66 = vunpack.c.l.b16 %v58
    %v67 = vunpack.c.l.b16 %v59
    %v68 = vpack.c.b16 %v67, %v66
    %vm70 = vcmask 130048
    %v72 = vsel %vm70, %v50, 0
    %v75 = vsel %vm70, %v51, 0
    %v78 = vsel %vm70, %v52, 0
    %v81 = vsel %vm70, %v53, 0
    %v84 = vsel %vm70, %v54, 0
    %v87 = vsel %vm70, %v55, 0
    %v90 = vsel %vm70, %v56, 0
    %v93 = vsel %vm70, %v57, 0
    %95 = vmatpush.bf16.msra.mxu0 0
    %96 = vmatpush.bf16.msra.mxu0 0
    %97 = vmatpush.bf16.msra.mxu0 0
    %98 = vmatpush.bf16.msra.mxu0 0
    %99 = vmatpush.bf16.msra.mxu0 0
    %100 = vmatpush.bf16.msra.mxu0 0
    %101 = vmatpush.bf16.msra.mxu0 0
    %102 = vmatpush.bf16.msra.mxu0 %v68
    %103 = vmatmul.bf16.gmra.mxu0 %v72
    %v104 = vpop.f32.mrf.mxu0
    %v105 = vadd.f32 %v62, %v104
    %v106 = vpop.f32.mrf.mxu0
    %v107 = vadd.f32 %v62, %v106
    %108 = vmatmul.bf16.gmra.mxu0 %v75
    %v109 = vpop.f32.mrf.mxu0
    %v110 = vadd.f32 %v62, %v109
    %v111 = vpop.f32.mrf.mxu0
    %v112 = vadd.f32 %v62, %v111
    %113 = vmatmul.bf16.gmra.mxu0 %v78
    %v114 = vpop.f32.mrf.mxu0
    %v115 = vadd.f32 %v62, %v114
    %v116 = vpop.f32.mrf.mxu0
    %v117 = vadd.f32 %v62, %v116
    %118 = vmatmul.bf16.gmra.mxu0 %v81
    %v119 = vpop.f32.mrf.mxu0
    %v120 = vadd.f32 %v62, %v119
    %v121 = vpop.f32.mrf.mxu0
    %v122 = vadd.f32 %v62, %v121
    %123 = vmatmul.bf16.gmra.mxu0 %v84
    %v124 = vpop.f32.mrf.mxu0
    %v125 = vadd.f32 %v62, %v124
    %v126 = vpop.f32.mrf.mxu0
    %v127 = vadd.f32 %v62, %v126
    %128 = vmatmul.bf16.gmra.mxu0 %v87
    %v129 = vpop.f32.mrf.mxu0
    %v130 = vadd.f32 %v62, %v129
    %v131 = vpop.f32.mrf.mxu0
    %v132 = vadd.f32 %v62, %v131
    %133 = vmatmul.bf16.gmra.mxu0 %v90
    %v134 = vpop.f32.mrf.mxu0
    %v135 = vadd.f32 %v62, %v134
    %v136 = vpop.f32.mrf.mxu0
    %v137 = vadd.f32 %v62, %v136
    %138 = vmatmul.bf16.gmra.mxu0 %v93
    %v139 = vpop.f32.mrf.mxu0
    %v140 = vadd.f32 %v62, %v139
    %v141 = vpop.f32.mrf.mxu0
    %v142 = vadd.f32 %v62, %v141
    %143 = vdwg.mxu0
    %v144 = vmul.f32 %v105, 0.01
    %v145 = vmul.f32 %v107, 0.01
    %v146 = vmul.f32 %v110, 0.01
    %v147 = vmul.f32 %v112, 0.01
    %v148 = vmul.f32 %v115, 0.01
    %v149 = vmul.f32 %v117, 0.01
    %v150 = vmul.f32 %v120, 0.01
    %v151 = vmul.f32 %v122, 0.01
    %v152 = vmul.f32 %v125, 0.01
    %v153 = vmul.f32 %v127, 0.01
    %v154 = vmul.f32 %v130, 0.01
    %v155 = vmul.f32 %v132, 0.01
    %v156 = vmul.f32 %v135, 0.01
    %v157 = vmul.f32 %v137, 0.01
    %v158 = vmul.f32 %v140, 0.01
    %v159 = vmul.f32 %v142, 0.01
    %v160 = vmax.f32 %v105, %v144
    %v161 = vmax.f32 %v107, %v145
    %v162 = vmax.f32 %v110, %v146
    %v163 = vmax.f32 %v112, %v147
    %v164 = vmax.f32 %v115, %v148
    %v165 = vmax.f32 %v117, %v149
    %v166 = vmax.f32 %v120, %v150
    %v167 = vmax.f32 %v122, %v151
    %v168 = vmax.f32 %v125, %v152
    %v169 = vmax.f32 %v127, %v153
    %v170 = vmax.f32 %v130, %v154
    %v171 = vmax.f32 %v132, %v155
    %v172 = vmax.f32 %v135, %v156
    %v173 = vmax.f32 %v137, %v157
    %v174 = vmax.f32 %v140, %v158
    %v175 = vmax.f32 %v142, %v159
    %176 = vxpose.xlu0.b32.start [1/16] %v160, 128
    %177 = vxpose.xlu0.b32.cont [2/16] %v161, 128
    %178 = vxpose.xlu0.b32.cont [3/16] %v162, 128
    %179 = vxpose.xlu0.b32.cont [4/16] %v163, 128
    %180 = vxpose.xlu0.b32.cont [5/16] %v164, 128
    %181 = vxpose.xlu0.b32.cont [6/16] %v165, 128
    %182 = vxpose.xlu0.b32.cont [7/16] %v166, 128
    %183 = vxpose.xlu0.b32.cont [8/16] %v167, 128
    %184 = vxpose.xlu0.b32.cont [9/16] %v168, 128
    %185 = vxpose.xlu0.b32.cont [10/16] %v169, 128
    %186 = vxpose.xlu0.b32.cont [11/16] %v170, 128
    %187 = vxpose.xlu0.b32.cont [12/16] %v171, 128
    %188 = vxpose.xlu0.b32.cont [13/16] %v172, 128
    %189 = vxpose.xlu0.b32.cont [14/16] %v173, 128
    %190 = vxpose.xlu0.b32.cont [15/16] %v174, 128
    %191 = vxpose.xlu0.b32.end [16/16] %v175, 128
    %v192 = vpop.trf.xlu0
    %v193 = vpop.trf.xlu0
    %v194 = vpop.trf.xlu0
    %v195 = vpop.trf.xlu0
    %v196 = vpop.trf.xlu0
    %v197 = vpop.trf.xlu0
    %v198 = vpop.trf.xlu0
    %v199 = vpop.trf.xlu0
    %v200 = vpop.trf.xlu0
    %v201 = vpop.trf.xlu0
    %v202 = vpop.trf.xlu0
    %v203 = vpop.trf.xlu0
    %v204 = vpop.trf.xlu0
    %v205 = vpop.trf.xlu0
    %v206 = vpop.trf.xlu0
    %v207 = vpop.trf.xlu0
    %v208 = vld [vmem:[%s3] sm:$0xf]
    %v209 = vld [vmem:[%s3 + $0x4] sm:$0xf]
    %v210 = vld [vmem:[%s3 + $0x8] sm:$0xf]
    %v211 = vld [vmem:[%s3 + $0xc] sm:$0xf]
    %v212 = vld [vmem:[%s3 + $0x10] sm:$0xf]
    %v213 = vld [vmem:[%s3 + $0x14] sm:$0xf]
    %v214 = vld [vmem:[%s3 + $0x18] sm:$0xf]
    %v215 = vld [vmem:[%s3 + $0x1c] sm:$0xf]
    %v216 = vpack.c.bf16 %v193, %v192
    %v217 = vpack.c.bf16 %v195, %v194
    %v218 = vpack.c.bf16 %v197, %v196
    %v219 = vpack.c.bf16 %v199, %v198
    %v220 = vpack.c.bf16 %v201, %v200
    %v221 = vpack.c.bf16 %v203, %v202
    %v222 = vpack.c.bf16 %v205, %v204
    %v223 = vpack.c.bf16 %v207, %v206
    %v224 = vld [vmem:[%s4] sm:$0xff]
    %v225 = vld [vmem:[%s4 + $0x8] sm:$0xff]
    %v226 = vld [vmem:[%s4 + $0x10] sm:$0xff]
    %v227 = vld [vmem:[%s4 + $0x18] sm:$0xff]
    %v228 = vld [vmem:[%s4 + $0x20] sm:$0xff]
    %v229 = vld [vmem:[%s4 + $0x28] sm:$0xff]
    %v230 = vld [vmem:[%s4 + $0x30] sm:$0xff]
    %v231 = vld [vmem:[%s4 + $0x38] sm:$0xff]
    %233 = vset.pattern.permute.xlu0 0
    %234 = vperm.xlu0 %233, %v224
    %v235 = vpop.permute.xlu0 %234
    %238 = vset.pattern.permute.xlu0 0
    %239 = vperm.xlu0 %238, %v225
    %v240 = vpop.permute.xlu0 %239
    %243 = vset.pattern.permute.xlu0 0
    %244 = vperm.xlu0 %243, %v226
    %v245 = vpop.permute.xlu0 %244
    %248 = vset.pattern.permute.xlu0 0
    %249 = vperm.xlu0 %248, %v227
    %v250 = vpop.permute.xlu0 %249
    %253 = vset.pattern.permute.xlu0 0
    %254 = vperm.xlu0 %253, %v228
    %v255 = vpop.permute.xlu0 %254
    %258 = vset.pattern.permute.xlu0 0
    %259 = vperm.xlu0 %258, %v229
    %v260 = vpop.permute.xlu0 %259
    %263 = vset.pattern.permute.xlu0 0
    %264 = vperm.xlu0 %263, %v230
    %v265 = vpop.permute.xlu0 %264
    %268 = vset.pattern.permute.xlu0 0
    %269 = vperm.xlu0 %268, %v231
    %v270 = vpop.permute.xlu0 %269
    %v280 = vunpack.c.l.b16 %v208
    %v281 = vunpack.c.l.b16 %v209
    %v282 = vunpack.c.l.b16 %v210
    %v283 = vunpack.c.l.b16 %v211
    %v284 = vunpack.c.l.b16 %v212
    %v285 = vunpack.c.l.b16 %v213
    %v286 = vunpack.c.l.b16 %v214
    %v287 = vunpack.c.l.b16 %v215
    %v288 = vpack.c.b16 %v281, %v280
    %v289 = vpack.c.b16 %v283, %v282
    %v290 = vpack.c.b16 %v285, %v284
    %v291 = vpack.c.b16 %v287, %v286
    %296 = vmatpush.bf16.msra.mxu0 %v223
    %297 = vmatpush.bf16.msra.mxu0 %v222
    %298 = vmatpush.bf16.msra.mxu0 %v221
    %299 = vmatpush.bf16.msra.mxu0 %v220
    %300 = vmatpush.bf16.msra.mxu0 %v219
    %301 = vmatpush.bf16.msra.mxu0 %v218
    %302 = vmatpush.bf16.msra.mxu0 %v217
    %303 = vmatpush.bf16.msra.mxu0 %v216
    %304 = vmatmul.bf16.gmra.mxu0 %v288
    %v305 = vpop.f32.mrf.mxu0
    %v306 = vadd.f32 %v235, %v305
    %v307 = vpop.f32.mrf.mxu0
    %v308 = vadd.f32 %v240, %v307
    %309 = vmatmul.bf16.gmra.mxu0 %v289
    %v310 = vpop.f32.mrf.mxu0
    %v311 = vadd.f32 %v245, %v310
    %v312 = vpop.f32.mrf.mxu0
    %v313 = vadd.f32 %v250, %v312
    %314 = vmatmul.bf16.gmra.mxu0 %v290
    %v315 = vpop.f32.mrf.mxu0
    %v316 = vadd.f32 %v255, %v315
    %v317 = vpop.f32.mrf.mxu0
    %v318 = vadd.f32 %v260, %v317
    %319 = vmatmul.bf16.gmra.mxu0 %v291
    %v320 = vpop.f32.mrf.mxu0
    %v321 = vadd.f32 %v265, %v320
    %v322 = vpop.f32.mrf.mxu0
    %v323 = vadd.f32 %v270, %v322
    %324 = vdwg.mxu0
    %v325 = vmul.f32 %v306, 0.01
    %v326 = vmul.f32 %v308, 0.01
    %v327 = vmul.f32 %v311, 0.01
    %v328 = vmul.f32 %v313, 0.01
    %v329 = vmul.f32 %v316, 0.01
    %v330 = vmul.f32 %v318, 0.01
    %v331 = vmul.f32 %v321, 0.01
    %v332 = vmul.f32 %v323, 0.01
    %v333 = vmax.f32 %v306, %v325
    %v334 = vmax.f32 %v308, %v326
    %v335 = vmax.f32 %v311, %v327
    %v336 = vmax.f32 %v313, %v328
    %v337 = vmax.f32 %v316, %v329
    %v338 = vmax.f32 %v318, %v330
    %v339 = vmax.f32 %v321, %v331
    %v340 = vmax.f32 %v323, %v332
    %v341 = vld [vmem:[%s5] sm:$0xf]
    %v342 = vld [vmem:[%s5 + $0x4] sm:$0xf]
    %v343 = vld [vmem:[%s5 + $0x8] sm:$0xf]
    %v344 = vld [vmem:[%s5 + $0xc] sm:$0xf]
    %v345 = vpack.c.bf16 %v334, %v333
    %v346 = vpack.c.bf16 %v336, %v335
    %v347 = vpack.c.bf16 %v338, %v337
    %v348 = vpack.c.bf16 %v340, %v339
    %v349 = vld [vmem:[%s6] sm:$0xff]
    %v350 = vld [vmem:[%s6 + $0x8] sm:$0xff]
    %v351 = vld [vmem:[%s6 + $0x10] sm:$0xff]
    %v352 = vld [vmem:[%s6 + $0x18] sm:$0xff]
    %354 = vset.pattern.permute.xlu0 0
    %355 = vperm.xlu0 %354, %v349
    %v356 = vpop.permute.xlu0 %355
    %359 = vset.pattern.permute.xlu0 0
    %360 = vperm.xlu0 %359, %v350
    %v361 = vpop.permute.xlu0 %360
    %364 = vset.pattern.permute.xlu0 0
    %365 = vperm.xlu0 %364, %v351
    %v366 = vpop.permute.xlu0 %365
    %369 = vset.pattern.permute.xlu0 0
    %370 = vperm.xlu0 %369, %v352
    %v371 = vpop.permute.xlu0 %370
    %v377 = vunpack.c.l.b16 %v341
    %v378 = vunpack.c.l.b16 %v342
    %v379 = vunpack.c.l.b16 %v343
    %v380 = vunpack.c.l.b16 %v344
    %v381 = vpack.c.b16 %v378, %v377
    %v382 = vpack.c.b16 %v380, %v379
    %vm383 = vcmask 523264
    %v385 = vsel %vm383, %v381, 0
    %v388 = vsel %vm383, %v382, 0
    %390 = vmatpush.bf16.msra.mxu0 0
    %391 = vmatpush.bf16.msra.mxu0 0
    %392 = vmatpush.bf16.msra.mxu0 0
    %393 = vmatpush.bf16.msra.mxu0 0
    %394 = vmatpush.bf16.msra.mxu0 %v348
    %395 = vmatpush.bf16.msra.mxu0 %v347
    %396 = vmatpush.bf16.msra.mxu0 %v346
    %397 = vmatpush.bf16.msra.mxu0 %v345
    %398 = vmatmul.bf16.gmra.mxu0 %v385
    %v399 = vpop.f32.mrf.mxu0
    %v400 = vadd.f32 %v356, %v399
    %v401 = vpop.f32.mrf.mxu0
    %v402 = vadd.f32 %v361, %v401
    %403 = vmatmul.bf16.gmra.mxu0 %v388
    %v404 = vpop.f32.mrf.mxu0
    %v405 = vadd.f32 %v366, %v404
    %v406 = vpop.f32.mrf.mxu0
    %v407 = vadd.f32 %v371, %v406
    %408 = vdwg.mxu0
    %v409 = vmul.f32 %v400, 0.01
    %v410 = vmul.f32 %v402, 0.01
    %v411 = vmul.f32 %v405, 0.01
    %v412 = vmul.f32 %v407, 0.01
    %v413 = vmax.f32 %v400, %v409
    %v414 = vmax.f32 %v402, %v410
    %v415 = vmax.f32 %v405, %v411
    %v416 = vmax.f32 %v407, %v412
    %v417 = vld [vmem:[%s7] sm:$0xf]
    %v418 = vpack.c.bf16 %v414, %v413
    %v419 = vpack.c.bf16 %v416, %v415
    %v420 = vld [vmem:[%s8] sm:$0xff]
    %422 = vset.pattern.permute.xlu0 0
    %423 = vperm.xlu0 %422, %v420
    %v424 = vpop.permute.xlu0 %423
    %vm426 = vcmask 261120
    %v428 = vsel %vm426, %v417, 0
    %430 = vmatpush.bf16.msra.mxu0 0
    %431 = vmatpush.bf16.msra.mxu0 0
    %432 = vmatpush.bf16.msra.mxu0 0
    %433 = vmatpush.bf16.msra.mxu0 0
    %434 = vmatpush.bf16.msra.mxu0 0
    %435 = vmatpush.bf16.msra.mxu0 0
    %436 = vmatpush.bf16.msra.mxu0 %v419
    %437 = vmatpush.bf16.msra.mxu0 %v418
    %438 = vmatmul.bf16.gmra.mxu0 %v428
    %v439 = vpop.f32.mrf.mxu0
    %v440 = vadd.f32 %v424, %v439
    %v441 = vpop.f32.mrf.mxu0
    %442 = vdwg.mxu0
    %443 = vst [vmem:[#allocation2] sm:$0x1] %v440
    // Predicated region
    $region38: #{tpu_custom_call.1} parent=1 // pred_check
      _
    $region39: #{tpu_custom_call.1} parent=1 // pred_check_branch
      %445 = sbr.rel (0) target = $region41
    $region40: #{tpu_custom_call.1} parent=1 // pred_region
      %447 = vsyncadd [#allocation3], 0
      %s449 = sshll.u32 [#allocation2], 4
      %s450 = int_to_ptr.vmem [resolvable:$true] %s449
      %s451 = sshll.u32 %s9, 4
      %s452 = int_to_ptr.hbm [resolvable:$true] %s451
      %454 = dma.vmem_to_hbm [thread:$0]  %s450, 16, %s452, [#allocation3]
    $region41: #{tpu_custom_call.1} parent=1 // pred_fallthru
      _
    // Predicated region
    $region42: #{tpu_custom_call.1} parent=1 // pred_check
      _
    $region43: #{tpu_custom_call.1} parent=1 // pred_check_branch
      %456 = sbr.rel (0) target = $region45
    $region44: #{tpu_custom_call.1} parent=1 // pred_region
      %458 = dma.done [#allocation3], 16
    $region45: #{tpu_custom_call.1} parent=1 // pred_fallthru
      _
    %459 = vsyncpa [#allocation3], 1

</llo_original>
